<compile_context>
chip_gen: v7x
topology: tpu7x:2x2x1
jax: 0.10.0
libtpu: 0.0.40
codegen_flags: <defaults>
</compile_context>

<pallas_src>
import functools

import jax
import jax.numpy as jnp
from jax.experimental import pallas as pl
from jax.experimental.pallas import tpu as pltpu

LEAKY_SLOPE = 0.01  # nn.LeakyReLU() default negative_slope

_COL_TARGET = 2048            # aim for >= this many lane columns per grid step
_MAX_BATCH_BLOCK = 16         # cap on static batch unroll inside the kernel
_VMEM_BUDGET = 40 * 1024 * 1024   # conservative: leaves headroom on v7x (64 MiB)


# ----------------------------------------------------------------------------
# Kernels
# ----------------------------------------------------------------------------
def _stnet_cols_kernel(x_ref, w1t_ref, b1_ref, w2t_ref, b2_ref, o_ref):
    """NCHW path: channels on sublanes, spatial pixels on lanes.

    x_ref: (NB, Cin, T); o_ref: (NB, Cout, T); biases pre-broadcast to lane
    width (Cout, T) when T is 128-aligned, else (Cout, 1) (broadcast add).
    out = LeakyReLU(W2t @ LeakyReLU(W1t @ x + b1) + b2)
    """
    w1t = w1t_ref[...]
    w2t = w2t_ref[...]
    b1 = b1_ref[...]
    b2 = b2_ref[...]
    for i in range(x_ref.shape[0]):          # static unroll over the batch block
        x = x_ref[i]                         # (Cin, T)
        h = jnp.dot(w1t, x, preferred_element_type=jnp.float32) + b1
        h = jnp.where(h >= 0, h, LEAKY_SLOPE * h)
        h = jnp.dot(w2t, h, preferred_element_type=jnp.float32) + b2
        h = jnp.where(h >= 0, h, LEAKY_SLOPE * h)
        o_ref[i] = h.astype(o_ref.dtype)


def _stnet_rows_kernel(x_ref, w1_ref, b1_ref, w2_ref, b2_ref, o_ref):
    """HWC-native path (full=True): pixels on sublanes, channels on lanes."""
    x = x_ref[...]                           # (TR, Cin)
    h = jnp.dot(x, w1_ref[...], preferred_element_type=jnp.float32) + b1_ref[...]
    h = jnp.where(h >= 0, h, LEAKY_SLOPE * h)
    h = jnp.dot(h, w2_ref[...], preferred_element_type=jnp.float32) + b2_ref[...]
    h = jnp.where(h >= 0, h, LEAKY_SLOPE * h)
    o_ref[...] = h.astype(o_ref.dtype)


# ----------------------------------------------------------------------------
# Wrappers
# ----------------------------------------------------------------------------
@functools.partial(jax.jit, static_argnames=("tile_cols", "out_dtype"))
def _stnet_nchw(x_nchw, s1, t1, w1, b1, s2, t2, w2, b2, *,
                tile_cols=8192, out_dtype=jnp.float32):
    """x_nchw: (N, C, H, W) float32 -> (N, Cout, H, W) (eval-mode BN)."""
    assert tile_cols % 128 == 0, "tile_cols must be a multiple of 128"
    n, c_in, h, w = x_nchw.shape
    c_out = w1.shape[1]
    hw = h * w
    out_isz = jnp.dtype(out_dtype).itemsize

    # --- tiling: big lane tiles; batch-block when H*W is small ---------------
    if hw > tile_cols:
        tc, nb = tile_cols, 1
    else:
        tc = hw
        nb = min(n, max(1, _COL_TARGET // hw), _MAX_BATCH_BLOCK)
    # v7x megacore: make sure there are >= 2 grid blocks when the problem allows.
    if pl.cdiv(n, nb) * pl.cdiv(hw, tc) == 1:
        if n >= 2:
            nb = (n + 1) // 2
        elif hw >= 256:
            tc = -(-((hw + 1) // 2) // 128) * 128

    # --- explicit VMEM budget -------------------------------------------------
    def _est(nb_, tc_):
        bw = tc_ if tc_ % 128 == 0 else 1
        return (2 * nb_ * c_in * tc_ * 4                 # input block (dbl-buf)
                + 2 * nb_ * c_out * tc_ * out_isz        # output block (dbl-buf)
                + 2 * (c_out * c_in + c_out * c_out) * 4 # weights
                + 2 * 2 * c_out * bw * 4                 # lane-replicated biases
                + (c_in + 3 * c_out) * tc_ * 4)          # live temporaries

    while tc > 512 and tc % 128 == 0 and _est(nb, tc) > _VMEM_BUDGET:
        tc = max(512, -(-(tc // 2) // 128) * 128)
    while nb > 1 and _est(nb, tc) > _VMEM_BUDGET:
        nb = (nb + 1) // 2
    while n % nb:                 # keep batch blocks evenly divisible
        nb -= 1
    bias_w = tc if tc % 128 == 0 else 1
    vmem_limit = int(min(max(2 * _est(nb, tc), 32 * 1024 * 1024),
                         56 * 1024 * 1024))

    # --- fold eval-mode BN (per-channel scale s / shift t) into the 1x1 conv --
    #   (x * s + t) @ W + b  ==  x @ (diag(s) W) + (t @ W + b)
    w1t = (w1 * s1.reshape(-1, 1)).T                         # (Cout, Cin)
    w2t = (w2 * s2.reshape(-1, 1)).T                         # (Cout, Cout)
    b1f = jnp.broadcast_to((t1 @ w1 + b1).reshape(c_out, 1), (c_out, bias_w))
    b2f = jnp.broadcast_to((t2 @ w2 + b2).reshape(c_out, 1), (c_out, bias_w))

    x_cm = x_nchw.reshape(n, c_in, hw)        # free reshape: spatial on lanes
    grid = (pl.cdiv(n, nb), pl.cdiv(hw, tc))

    out = pl.pallas_call(
        _stnet_cols_kernel,
        out_shape=jax.ShapeDtypeStruct((n, c_out, hw), out_dtype),
        grid_spec=pltpu.PrefetchScalarGridSpec(
            num_scalar_prefetch=0,
            grid=grid,
            in_specs=[
                pl.BlockSpec((nb, c_in, tc), lambda b, j: (b, 0, j)),
                pl.BlockSpec((c_out, c_in), lambda b, j: (0, 0)),
                pl.BlockSpec((c_out, bias_w), lambda b, j: (0, 0)),
                pl.BlockSpec((c_out, c_out), lambda b, j: (0, 0)),
                pl.BlockSpec((c_out, bias_w), lambda b, j: (0, 0)),
            ],
            out_specs=pl.BlockSpec((nb, c_out, tc), lambda b, j: (b, 0, j)),
        ),
        compiler_params=pltpu.CompilerParams(
            dimension_semantics=("parallel", "parallel"),
            vmem_limit_bytes=vmem_limit),
    )(x_cm, w1t, b1f, w2t, b2f)

    return out.reshape(n, c_out, h, w)


@functools.partial(jax.jit, static_argnames=("tile_rows", "out_dtype"))
def _stnet_hwc(x_hwc, s1, t1, w1, b1, s2, t2, w2, b2, *,
               tile_rows=2048, out_dtype=jnp.float32):
    """x_hwc: (H, W, C) -> (H, W, Cout) with no wrapper transposes."""
    assert tile_rows % 8 == 0
    hh, ww, c_in = x_hwc.shape
    c_out = w1.shape[1]
    p = hh * ww
    out_isz = jnp.dtype(out_dtype).itemsize

    tr = tile_rows if p > tile_rows else p
    if pl.cdiv(p, tr) == 1 and p >= 16:
        tr = -(-((p + 1) // 2) // 8) * 8      # >=2 blocks for v7x megacore

    def _est(tr_):
        return (2 * tr_ * c_in * 4 + 2 * tr_ * c_out * out_isz
                + 2 * (c_in * c_out + c_out * c_out + 2 * c_out) * 4
                + 3 * tr_ * c_out * 4)

    while tr > 512 and tr % 8 == 0 and _est(tr) > _VMEM_BUDGET:
        tr = max(512, -(-(tr // 2) // 8) * 8)
    vmem_limit = int(min(max(2 * _est(tr), 32 * 1024 * 1024), 56 * 1024 * 1024))

    w1f = w1 * s1.reshape(-1, 1)              # (Cin, Cout), BN folded
    w2f = w2 * s2.reshape(-1, 1)              # (Cout, Cout)
    b1f = (t1 @ w1 + b1).reshape(1, c_out)
    b2f = (t2 @ w2 + b2).reshape(1, c_out)

    x2 = x_hwc.reshape(p, c_in)               # free reshape, no transpose
    grid = (pl.cdiv(p, tr),)

    out = pl.pallas_call(
        _stnet_rows_kernel,
        out_shape=jax.ShapeDtypeStruct((p, c_out), out_dtype),
        grid_spec=pltpu.PrefetchScalarGridSpec(
            num_scalar_prefetch=0,
            grid=grid,
            in_specs=[
                pl.BlockSpec((tr, c_in), lambda i: (i, 0)),
                pl.BlockSpec((c_in, c_out), lambda i: (0, 0)),
                pl.BlockSpec((1, c_out), lambda i: (0, 0)),
                pl.BlockSpec((c_out, c_out), lambda i: (0, 0)),
                pl.BlockSpec((1, c_out), lambda i: (0, 0)),
            ],
            out_specs=pl.BlockSpec((tr, c_out), lambda i: (i, 0)),
        ),
        compiler_params=pltpu.CompilerParams(
            dimension_semantics=("parallel",),
            vmem_limit_bytes=vmem_limit),
    )(x2, w1f, b1f, w2f, b2f)

    return out.reshape(hh, ww, c_out)


def stnet_forward(x, params, full=False, tile_cols=8192, out_dtype=jnp.float32):
    """Mirrors STnet.forward (eval-mode BN).

    full=False: x is NCHW (N, C, H, W) -> (N, Cout, H, W)
    full=True : x is HWC  (H, W, C)    -> (H, W, Cout)  (HWC-native, no transposes)
    """
    if full:
        return _stnet_hwc(x, *params, out_dtype=out_dtype)
    return _stnet_nchw(x, *params, tile_cols=tile_cols, out_dtype=out_dtype)


# ----------------------------------------------------------------------------
# Parameters & reference
# ----------------------------------------------------------------------------
def init_params(key, channel, outchannel, eps=1e-5):
    """Deterministic synthetic parameters with the shapes STnet.__init__ implies."""
    ks = jax.random.split(key, 12)

    def bn(k, c):
        gamma = jax.random.normal(k[0], (c,), jnp.float32) * 0.1 + 1.0
        beta = jax.random.normal(k[1], (c,), jnp.float32) * 0.1
        rmean = jax.random.normal(k[2], (c,), jnp.float32) * 0.05
        rvar = jnp.abs(jax.random.normal(k[3], (c,), jnp.float32)) * 0.1 + 1.0
        scale = gamma / jnp.sqrt(rvar + eps)
        shift = beta - rmean * scale
        return scale.reshape(1, c), shift.reshape(1, c)

    s1, t1 = bn(ks[0:4], channel)
    s2, t2 = bn(ks[4:8], outchannel)

    # Conv2d(kernel=1x1) weight (Cout, Cin, 1, 1) -> stored as (Cin, Cout).
    w1 = (jax.random.normal(ks[8], (channel, outchannel), jnp.float32)
          * (1.0 / jnp.sqrt(channel)))
    b1 = jax.random.normal(ks[9], (1, outchannel), jnp.float32) * 0.05
    w2 = (jax.random.normal(ks[10], (outchannel, outchannel), jnp.float32)
          * (1.0 / jnp.sqrt(outchannel)))
    b2 = jax.random.normal(ks[11], (1, outchannel), jnp.float32) * 0.05

    return (s1, t1, w1, b1, s2, t2, w2, b2)


def _reference(x_nchw, params):
    """Pure-JAX reference of the same forward (eval-mode BN, unfolded)."""
    s1, t1, w1, b1, s2, t2, w2, b2 = params
    n, c, h, w = x_nchw.shape
    xr = jnp.transpose(x_nchw, (0, 2, 3, 1)).reshape(-1, c)
    hdn = xr * s1 + t1
    hdn = hdn @ w1 + b1
    hdn = jnp.where(hdn >= 0, hdn, LEAKY_SLOPE * hdn)
    hdn = hdn * s2 + t2
    hdn = hdn @ w2 + b2
    hdn = jnp.where(hdn >= 0, hdn, LEAKY_SLOPE * hdn)
    co = hdn.shape[-1]
    return jnp.transpose(hdn.reshape(n, h, w, co), (0, 3, 1, 2))


if __name__ == "__main__":
    key = jax.random.PRNGKey(0)
    k_x, k_p, k_f, k_o = jax.random.split(key, 4)

    N, C, H, W = 2, 4, 16, 16
    C_OUT = 32

    x = jax.random.normal(k_x, (N, C, H, W), jnp.float32)
    params = init_params(k_p, C, C_OUT)
    ref = _reference(x, params)

    # Default path (batch-blocked small-HW tiling), f32 output.
    out = jax.block_until_ready(stnet_forward(x, params))
    assert out.shape == (N, C_OUT, H, W), out.shape
    assert jnp.allclose(out, ref, atol=1e-4, rtol=1e-4), "mismatch (full=False)"

    # Column-tiled path (tc < H*W) exercises the multi-block lane tiling.
    out_tiled = jax.block_until_ready(stnet_forward(x, params, tile_cols=128))
    assert jnp.allclose(out_tiled, ref, atol=1e-4, rtol=1e-4), "mismatch (tiled)"

    # bf16 output (halves the dominant write traffic on a BW-bound kernel).
    out_bf16 = jax.block_until_ready(
        stnet_forward(x, params, out_dtype=jnp.bfloat16))
    assert out_bf16.dtype == jnp.bfloat16
    assert jnp.allclose(out_bf16.astype(jnp.float32), ref,
                        atol=5e-2, rtol=5e-2), "mismatch (bf16 out)"

    # Non-128-aligned spatial extent (width-1 bias / ragged-free path).
    x_odd = jax.random.normal(k_o, (N, C, 10, 10), jnp.float32)
    out_odd = jax.block_until_ready(stnet_forward(x_odd, params))
    assert jnp.allclose(out_odd, _reference(x_odd, params),
                        atol=1e-4, rtol=1e-4), "mismatch (odd HW)"

    # full=True path: HWC in / HWC out, no wrapper transposes.
    x_full = jax.random.normal(k_f, (H, W, C), jnp.float32)
    out_full = jax.block_until_ready(stnet_forward(x_full, params, full=True))
    assert out_full.shape == (H, W, C_OUT), out_full.shape
    ref_full = jnp.transpose(
        _reference(jnp.expand_dims(jnp.transpose(x_full, (2, 0, 1)), 0),
                   params)[0], (1, 2, 0))
    assert jnp.allclose(out_full, ref_full, atol=1e-4, rtol=1e-4), \
        "mismatch (full=True)"

    print("KERNEL_OK")
</pallas_src>

<mosaic_0001>
module attributes {stable_mosaic.version = 11 : i64} {
  func.func @_stnet_cols_kernel(%arg0: i32, %arg1: i32, %arg2: memref<1x4x256xf32, #tpu.memory_space<vmem>>, %arg3: memref<32x4xf32, #tpu.memory_space<vmem>>, %arg4: memref<32x256xf32, #tpu.memory_space<vmem>>, %arg5: memref<32x32xf32, #tpu.memory_space<vmem>>, %arg6: memref<32x256xf32, #tpu.memory_space<vmem>>, %arg7: memref<1x32x256xf32, #tpu.memory_space<vmem>>) attributes {dimension_semantics = [#tpu.dimension_semantics<parallel>, #tpu.dimension_semantics<parallel>], iteration_bounds = array<i64: 2, 1>, scalar_prefetch = 0 : i64, scratch_operands = 0 : i64, tpu.core_type = #tpu.core_type<tc>, window_params = [{transform_indices = @transform_0, window_bounds = array<i64: 1, 4, 256>}, {pipeline_mode = #tpu.pipeline_mode<synchronous>, transform_indices = @transform_1, window_bounds = array<i64: 32, 4>}, {pipeline_mode = #tpu.pipeline_mode<synchronous>, transform_indices = @transform_2, window_bounds = array<i64: 32, 256>}, {pipeline_mode = #tpu.pipeline_mode<synchronous>, transform_indices = @transform_3, window_bounds = array<i64: 32, 32>}, {pipeline_mode = #tpu.pipeline_mode<synchronous>, transform_indices = @transform_4, window_bounds = array<i64: 32, 256>}, {transform_indices = @transform_5, window_bounds = array<i64: 1, 32, 256>}]} {
    %c0 = arith.constant 0 : index
    %c0_0 = arith.constant 0 : index
    %0 = vector.load %arg3[%c0, %c0_0] : memref<32x4xf32, #tpu.memory_space<vmem>>, vector<32x4xf32>
    %c0_1 = arith.constant 0 : index
    %c0_2 = arith.constant 0 : index
    %1 = vector.load %arg5[%c0_1, %c0_2] : memref<32x32xf32, #tpu.memory_space<vmem>>, vector<32x32xf32>
    %c0_3 = arith.constant 0 : index
    %c0_4 = arith.constant 0 : index
    %2 = vector.load %arg4[%c0_3, %c0_4] : memref<32x256xf32, #tpu.memory_space<vmem>>, vector<32x256xf32>
    %c0_5 = arith.constant 0 : index
    %c0_6 = arith.constant 0 : index
    %3 = vector.load %arg6[%c0_5, %c0_6] : memref<32x256xf32, #tpu.memory_space<vmem>>, vector<32x256xf32>
    %c0_7 = arith.constant 0 : index
    %c0_8 = arith.constant 0 : index
    %c0_9 = arith.constant 0 : index
    %4 = vector.load %arg2[%c0_7, %c0_8, %c0_9] : memref<1x4x256xf32, #tpu.memory_space<vmem>>, vector<1x4x256xf32>
    %5 = vector.shape_cast %4 : vector<1x4x256xf32> to vector<4x256xf32>
    %cst = arith.constant dense<0.000000e+00> : vector<32x256xf32>
    %6 = tpu.matmul %0, %5, %cst {dimension_numbers = #tpu.dot_dimension_numbers<[1], [0], [0], [1], [0, 0, 1, 1], [], []>} : vector<32x4xf32>, vector<4x256xf32>, vector<32x256xf32> -> vector<32x256xf32>
    %7 = arith.addf %6, %2 : vector<32x256xf32>
    %cst_10 = arith.constant 0.000000e+00 : f32
    %8 = vector.broadcast %cst_10 : f32 to vector<32x256xf32>
    %9 = arith.cmpf oge, %7, %8 : vector<32x256xf32>
    %cst_11 = arith.constant 0.00999999977 : f32
    %10 = vector.broadcast %cst_11 : f32 to vector<32x256xf32>
    %11 = arith.mulf %10, %7 : vector<32x256xf32>
    %12 = arith.select %9, %7, %11 : vector<32x256xi1>, vector<32x256xf32>
    %cst_12 = arith.constant dense<0.000000e+00> : vector<32x256xf32>
    %13 = tpu.matmul %1, %12, %cst_12 {dimension_numbers = #tpu.dot_dimension_numbers<[1], [0], [0], [1], [0, 0, 1, 1], [], []>} : vector<32x32xf32>, vector<32x256xf32>, vector<32x256xf32> -> vector<32x256xf32>
    %14 = arith.addf %13, %3 : vector<32x256xf32>
    %cst_13 = arith.constant 0.000000e+00 : f32
    %15 = vector.broadcast %cst_13 : f32 to vector<32x256xf32>
    %16 = arith.cmpf oge, %14, %15 : vector<32x256xf32>
    %cst_14 = arith.constant 0.00999999977 : f32
    %17 = vector.broadcast %cst_14 : f32 to vector<32x256xf32>
    %18 = arith.mulf %17, %14 : vector<32x256xf32>
    %19 = arith.select %16, %14, %18 : vector<32x256xi1>, vector<32x256xf32>
    %c0_15 = arith.constant 0 : index
    %c0_16 = arith.constant 0 : index
    %c0_17 = arith.constant 0 : index
    %20 = vector.load %arg7[%c0_15, %c0_16, %c0_17] : memref<1x32x256xf32, #tpu.memory_space<vmem>>, vector<1x32x256xf32>
    %21 = vector.shape_cast %20 : vector<1x32x256xf32> to vector<32x256xf32>
    %22 = vector.shape_cast %19 : vector<32x256xf32> to vector<1x32x256xf32>
    tpu.vector_store %arg7[%c0_15, %c0_16, %c0_17], %22 {strides = array<i32>} : memref<1x32x256xf32, #tpu.memory_space<vmem>>, vector<1x32x256xf32>,
    return
  }
  func.func @transform_0(%arg0: i32, %arg1: i32) -> (i32, i32, i32) {
    %c0_i32 = arith.constant 0 : i32
    %c0_i32_0 = arith.constant 0 : i32
    return %arg0, %c0_i32, %arg1 : i32, i32, i32
  }
  func.func @transform_1(%arg0: i32, %arg1: i32) -> (i32, i32) {
    %c0_i32 = arith.constant 0 : i32
    %c0_i32_0 = arith.constant 0 : i32
    %c0_i32_1 = arith.constant 0 : i32
    return %c0_i32, %c0_i32_0 : i32, i32
  }
  func.func @transform_2(%arg0: i32, %arg1: i32) -> (i32, i32) {
    %c0_i32 = arith.constant 0 : i32
    %c0_i32_0 = arith.constant 0 : i32
    %c0_i32_1 = arith.constant 0 : i32
    return %c0_i32, %c0_i32_0 : i32, i32
  }
  func.func @transform_3(%arg0: i32, %arg1: i32) -> (i32, i32) {
    %c0_i32 = arith.constant 0 : i32
    %c0_i32_0 = arith.constant 0 : i32
    %c0_i32_1 = arith.constant 0 : i32
    return %c0_i32, %c0_i32_0 : i32, i32
  }
  func.func @transform_4(%arg0: i32, %arg1: i32) -> (i32, i32) {
    %c0_i32 = arith.constant 0 : i32
    %c0_i32_0 = arith.constant 0 : i32
    %c0_i32_1 = arith.constant 0 : i32
    return %c0_i32, %c0_i32_0 : i32, i32
  }
  func.func @transform_5(%arg0: i32, %arg1: i32) -> (i32, i32, i32) {
    %c0_i32 = arith.constant 0 : i32
    %c0_i32_0 = arith.constant 0 : i32
    return %arg0, %c0_i32, %arg1 : i32, i32, i32
  }
}

</mosaic_0001>

<llo_original>
// kernel: _stnet_nchw.1
$region0: #{_stnet_nchw.1}
  #allocation0 [shape = 'u32[]', space=smem, size = 0x4, offset = 0x4, fixed_abs, tag = 'smem constant byte address 0x4 - core index']
  #allocation1 [shape = 'u32[144,128]{1,0:T(1,128)}', space=vmem, size = 0x12000, scoped, tag = 'internal scratch']
  %s0 = inlined_call_operand.vmem [shape: f32[2,4,256], index: 0, kind: input, shape index: {}]
  %s1 = inlined_call_operand.vmem [shape: f32[32,4], index: 1, kind: input, shape index: {}]
  %s2 = inlined_call_operand.vmem [shape: f32[32,256], index: 2, kind: input, shape index: {}]
  %s3 = inlined_call_operand.vmem [shape: f32[32,32], index: 3, kind: input, shape index: {}]
  %s4 = inlined_call_operand.vmem [shape: f32[32,256], index: 4, kind: input, shape index: {}]
  %s5 = inlined_call_operand.vmem [shape: f32[2,32,256], index: 5, kind: output, shape index: {}]
  %s6 = sld [smem:[#allocation0]]
  $region53: #{_stnet_nchw.1} parent=0
    _
  %s8 = ssub.s32 1, %s6
  %s9 = scalar_select 0, %s8, %s6
  loop: start=0, step=1, limit=4
  $region2: #{_stnet_nchw.1} parent=0 // loop_pre_header
    _
  $region3: #{_stnet_nchw.1} parent=0 // loop_header
    %s11 = sphi 0, %s15
    %p12 = scmp.ge.s32.totalorder %s11, 4
    %s18 = sphi 0, %s30
    %s19 = sphi 0, %s26
    %s20 = sphi 0, %s18
    %s21 = sphi 0, %s19
    %s22 = sphi 0, %s20
    %s23 = sphi 0, %s21
    %s35 = sphi 0, %s37
    %s38 = sphi 0, %s35
    %s39 = sphi 0, %s38
    %s55 = sphi 0, %s39
    %s59 = sphi 0, %s59
    %s61 = sphi 0, %s59
    %s62 = sphi 0, %s61
    %s76 = sphi 0, %s62
    %s80 = sphi 0, %s80
    %s82 = sphi 0, %s80
    %s83 = sphi 0, %s82
    %s97 = sphi 0, %s83
    %s101 = sphi 0, %s101
    %s103 = sphi 0, %s101
    %s104 = sphi 0, %s103
    %s118 = sphi 0, %s104
    %s122 = sphi 0, %s122
    %s124 = sphi 0, %s122
    %s125 = sphi 0, %s124
    %s139 = sphi 0, %s125
    %s147 = sphi 0, %s149
    %s150 = sphi 0, %s147
    %s151 = sphi 0, %s150
    %s167 = sphi 0, %s151
  $region4: #{_stnet_nchw.1} parent=0 // loop_header_branch
    %14 = sbr.rel (%p12) target = $region8
  $region5: #{_stnet_nchw.1} parent=0 // loop_body
    %s16 = ssub.s32 %s11, 1
    %s17 = ssub.s32 %s11, 2
    %s24 = sadd.s32 1, %s19
    %p25 = scmp.ge.s32.totalorder %s24, 1
    %s26 = scalar_select %p25, 0, %s24
    %s27 = sadd.s32 1, %s18
    %s28 = scalar_select %p25, %s27, %s18
    %p29 = scmp.ge.s32.totalorder %s28, 2
    %s30 = scalar_select %p29, 0, %s28
    %s31 = ssub.s32 %s18, %s30
    %s32 = ssub.s32 %s19, %s26
    %s33 = sor.u32 %s31, %s32
    %p34 = scmp.eq.s32.totalorder %s33, 0
    %s36 = sadd.s32 %s35, 1
    %s37 = scalar_select %p34, %s35, %s36
    %p40 = pneg %p34
    %p41 = scmp.eq.s32.totalorder %s11, 1
    %p42 = por %p40, %p41
    %p43 = scmp.ne.s32.totalorder %s35, %s38
    %p44 = scmp.eq.s32.totalorder %s11, 0
    %p45 = por %p43, %p44
    %p46 = scmp.ne.s32.totalorder %s35, %s38
    %p47 = scmp.eq.s32.totalorder %s16, 1
    %p48 = por %p46, %p47
    %p49 = scmp.ne.s32.totalorder %s38, %s39
    %p50 = scmp.eq.s32.totalorder %s16, 0
    %p51 = por %p49, %p50
    %p52 = scmp.ne.s32.totalorder %s38, %s39
    %p53 = scmp.eq.s32.totalorder %s17, 1
    %p54 = por %p52, %p53
    %p56 = scmp.ne.s32.totalorder %s39, %s55
    %p57 = scmp.eq.s32.totalorder %s17, 0
    %p58 = por %p56, %p57
    %s60 = sadd.s32 %s59, 1
    %p63 = scmp.eq.s32.totalorder %s11, 1
    %p64 = scmp.ne.s32.totalorder %s59, %s61
    %p65 = scmp.eq.s32.totalorder %s11, 0
    %p66 = por %p64, %p65
    %p67 = scmp.ne.s32.totalorder %s59, %s61
    %p68 = scmp.eq.s32.totalorder %s16, 1
    %p69 = por %p67, %p68
    %p70 = scmp.ne.s32.totalorder %s61, %s62
    %p71 = scmp.eq.s32.totalorder %s16, 0
    %p72 = por %p70, %p71
    %p73 = scmp.ne.s32.totalorder %s61, %s62
    %p74 = scmp.eq.s32.totalorder %s17, 1
    %p75 = por %p73, %p74
    %p77 = scmp.ne.s32.totalorder %s62, %s76
    %p78 = scmp.eq.s32.totalorder %s17, 0
    %p79 = por %p77, %p78
    %s81 = sadd.s32 %s80, 1
    %p84 = scmp.eq.s32.totalorder %s11, 1
    %p85 = scmp.ne.s32.totalorder %s80, %s82
    %p86 = scmp.eq.s32.totalorder %s11, 0
    %p87 = por %p85, %p86
    %p88 = scmp.ne.s32.totalorder %s80, %s82
    %p89 = scmp.eq.s32.totalorder %s16, 1
    %p90 = por %p88, %p89
    %p91 = scmp.ne.s32.totalorder %s82, %s83
    %p92 = scmp.eq.s32.totalorder %s16, 0
    %p93 = por %p91, %p92
    %p94 = scmp.ne.s32.totalorder %s82, %s83
    %p95 = scmp.eq.s32.totalorder %s17, 1
    %p96 = por %p94, %p95
    %p98 = scmp.ne.s32.totalorder %s83, %s97
    %p99 = scmp.eq.s32.totalorder %s17, 0
    %p100 = por %p98, %p99
    %s102 = sadd.s32 %s101, 1
    %p105 = scmp.eq.s32.totalorder %s11, 1
    %p106 = scmp.ne.s32.totalorder %s101, %s103
    %p107 = scmp.eq.s32.totalorder %s11, 0
    %p108 = por %p106, %p107
    %p109 = scmp.ne.s32.totalorder %s101, %s103
    %p110 = scmp.eq.s32.totalorder %s16, 1
    %p111 = por %p109, %p110
    %p112 = scmp.ne.s32.totalorder %s103, %s104
    %p113 = scmp.eq.s32.totalorder %s16, 0
    %p114 = por %p112, %p113
    %p115 = scmp.ne.s32.totalorder %s103, %s104
    %p116 = scmp.eq.s32.totalorder %s17, 1
    %p117 = por %p115, %p116
    %p119 = scmp.ne.s32.totalorder %s104, %s118
    %p120 = scmp.eq.s32.totalorder %s17, 0
    %p121 = por %p119, %p120
    %s123 = sadd.s32 %s122, 1
    %p126 = scmp.eq.s32.totalorder %s11, 1
    %p127 = scmp.ne.s32.totalorder %s122, %s124
    %p128 = scmp.eq.s32.totalorder %s11, 0
    %p129 = por %p127, %p128
    %p130 = scmp.ne.s32.totalorder %s122, %s124
    %p131 = scmp.eq.s32.totalorder %s16, 1
    %p132 = por %p130, %p131
    %p133 = scmp.ne.s32.totalorder %s124, %s125
    %p134 = scmp.eq.s32.totalorder %s16, 0
    %p135 = por %p133, %p134
    %p136 = scmp.ne.s32.totalorder %s124, %s125
    %p137 = scmp.eq.s32.totalorder %s17, 1
    %p138 = por %p136, %p137
    %p140 = scmp.ne.s32.totalorder %s125, %s139
    %p141 = scmp.eq.s32.totalorder %s17, 0
    %p142 = por %p140, %p141
    %s143 = ssub.s32 %s18, %s30
    %s144 = ssub.s32 %s19, %s26
    %s145 = sor.u32 %s143, %s144
    %p146 = scmp.eq.s32.totalorder %s145, 0
    %s148 = sadd.s32 %s147, 1
    %s149 = scalar_select %p146, %s147, %s148
    %p152 = pneg %p146
    %p153 = scmp.eq.s32.totalorder %s11, 1
    %p154 = por %p152, %p153
    %p155 = scmp.ne.s32.totalorder %s147, %s150
    %p156 = scmp.eq.s32.totalorder %s11, 0
    %p157 = por %p155, %p156
    %p158 = scmp.ne.s32.totalorder %s147, %s150
    %p159 = scmp.eq.s32.totalorder %s16, 1
    %p160 = por %p158, %p159
    %p161 = scmp.ne.s32.totalorder %s150, %s151
    %p162 = scmp.eq.s32.totalorder %s16, 0
    %p163 = por %p161, %p162
    %p164 = scmp.ne.s32.totalorder %s150, %s151
    %p165 = scmp.eq.s32.totalorder %s17, 1
    %p166 = por %p164, %p165
    %p168 = scmp.ne.s32.totalorder %s151, %s167
    %p169 = scmp.eq.s32.totalorder %s17, 0
    %p170 = por %p168, %p169
    %p171 = scmp.le.s32.totalorder 1, %s11
    %p172 = scmp.lt.s32.totalorder %s11, 3
    %p173 = pnand %p171, %p172
    %p174 = pneg %p173
    // Predicated region
    $region9: #{_stnet_nchw.1} parent=5 // pred_check
      _
    $region10: #{_stnet_nchw.1} parent=5 // pred_check_branch
      %176 = sbr.rel (%p173) target = $region12
    $region11: #{_stnet_nchw.1} parent=5 // pred_region
      %s177 = ssub.s32 %s11, 1
      // Predicated region
      $region13: #{_stnet_nchw.1} parent=11 // pred_check
        %p178 = pneg %p72
      $region14: #{_stnet_nchw.1} parent=11 // pred_check_branch
        %180 = sbr.rel (%p178) target = $region16
      $region15: #{_stnet_nchw.1} parent=11 // pred_region
        _
      $region16: #{_stnet_nchw.1} parent=11 // pred_fallthru
        _
      // Predicated region
      $region17: #{_stnet_nchw.1} parent=11 // pred_check
        %p181 = pneg %p93
      $region18: #{_stnet_nchw.1} parent=11 // pred_check_branch
        %183 = sbr.rel (%p181) target = $region20
      $region19: #{_stnet_nchw.1} parent=11 // pred_region
        _
      $region20: #{_stnet_nchw.1} parent=11 // pred_fallthru
        _
      // Predicated region
      $region21: #{_stnet_nchw.1} parent=11 // pred_check
        %p184 = pneg %p114
      $region22: #{_stnet_nchw.1} parent=11 // pred_check_branch
        %186 = sbr.rel (%p184) target = $region24
      $region23: #{_stnet_nchw.1} parent=11 // pred_region
        _
      $region24: #{_stnet_nchw.1} parent=11 // pred_fallthru
        _
      // Predicated region
      $region25: #{_stnet_nchw.1} parent=11 // pred_check
        %p187 = pneg %p135
      $region26: #{_stnet_nchw.1} parent=11 // pred_check_branch
        %189 = sbr.rel (%p187) target = $region28
      $region27: #{_stnet_nchw.1} parent=11 // pred_region
        _
      $region28: #{_stnet_nchw.1} parent=11 // pred_fallthru
        _
    $region12: #{_stnet_nchw.1} parent=5 // pred_fallthru
      _
    %p190 = scmp.lt.s32.totalorder %s11, 2
    // Predicated region
    $region29: #{_stnet_nchw.1} parent=5 // pred_check
      %p191 = pneg %p190
    $region30: #{_stnet_nchw.1} parent=5 // pred_check_branch
      %193 = sbr.rel (%p191) target = $region32
    $region31: #{_stnet_nchw.1} parent=5 // pred_region
      // Predicated region
      $region33: #{_stnet_nchw.1} parent=31 // pred_check
        %p194 = pneg %p45
      $region34: #{_stnet_nchw.1} parent=31 // pred_check_branch
        %196 = sbr.rel (%p194) target = $region36
      $region35: #{_stnet_nchw.1} parent=31 // pred_region
        %s197 = smul.u32 2, %s19
        %p198 = scmp.lt.s32.totalorder %s18, 1
        %s199 = scalar_select %p198, %s18, 1
        %p200 = scmp.lt.s32.totalorder %s197, 1
        %s201 = scalar_select %p200, %s197, 1
        %s202 = smul.addr %s199, 2
        %s203 = sadd.s32 %s201, %s202
        %s204 = smul.addr %s203, 4
        %s205 = scalar_lea.vmem %s0, %s204
        %s206 = smul.u32 2, %s19
      $region36: #{_stnet_nchw.1} parent=31 // pred_fallthru
        _
    $region32: #{_stnet_nchw.1} parent=5 // pred_fallthru
      _
    %p207 = scmp.le.s32.totalorder 1, %s11
    %p208 = scmp.lt.s32.totalorder %s11, 3
    %p209 = pnand %p207, %p208
    %p210 = pneg %p209
    // Predicated region
    $region37: #{_stnet_nchw.1} parent=5 // pred_check
      _
    $region38: #{_stnet_nchw.1} parent=5 // pred_check_branch
      %212 = sbr.rel (%p209) target = $region40
    $region39: #{_stnet_nchw.1} parent=5 // pred_region
      %s213 = ssub.s32 %s11, 1
      %s214 = smul.u32 2, %s21
      %p215 = scmp.lt.s32.totalorder %s20, 1
      %s216 = scalar_select %p215, %s20, 1
      %p217 = scmp.lt.s32.totalorder %s214, 1
      %s218 = scalar_select %p217, %s214, 1
      %s219 = smul.addr %s216, 2
      %s220 = sadd.s32 %s218, %s219
      %s221 = smul.addr %s220, 4
      %s222 = scalar_lea.vmem %s0, %s221
      %p223 = pneg %p51
      %p224 = pneg %p48
      %p225 = pneg %p72
      %p226 = pneg %p69
      %p227 = pneg %p93
      %p228 = pneg %p90
      %p229 = pneg %p114
      %p230 = pneg %p111
      %p231 = pneg %p135
      %p232 = pneg %p132
      %p233 = pneg %p163
      %p234 = pneg %p160
      %s235 = smul.u32 2, %s21
      %p236 = scmp.lt.s32.totalorder %s20, 1
      %s237 = scalar_select %p236, %s20, 1
      %p238 = scmp.lt.s32.totalorder %s235, 1
      %s239 = scalar_select %p238, %s235, 1
      %s240 = smul.addr %s237, 8
      %s241 = sadd.s32 %s239, %s240
      %s242 = smul.addr %s241, 8
      %s243 = scalar_lea.vmem %s5, %s242
      %s244 = smul.u32 2, %s21
      %p245 = scmp.lt.s32.totalorder %s20, 1
      %s246 = scalar_select %p245, %s20, 1
      %p247 = scmp.lt.s32.totalorder %s244, 1
      %s248 = scalar_select %p247, %s244, 1
      %s249 = smul.addr %s246, 2
      %s250 = sadd.s32 %s248, %s249
      %s251 = smul.addr %s250, 4
      %s252 = scalar_lea.vmem %s0, %s251
      %s253 = smul.u32 2, %s21
      %s254 = smul.u32 2, %s21
      %p255 = scmp.lt.s32.totalorder %s20, 1
      %s256 = scalar_select %p255, %s20, 1
      %p257 = scmp.lt.s32.totalorder %s254, 1
      %s258 = scalar_select %p257, %s254, 1
      %s259 = smul.addr %s256, 8
      %s260 = sadd.s32 %s258, %s259
      %s261 = smul.addr %s260, 8
      %s262 = scalar_lea.vmem %s5, %s261
      %s263 = smul.u32 2, %s21
      %v264 = vld [vmem:[%s1] sm:$0xff]
      %v265 = vld [vmem:[%s1 + $0x8] sm:$0xff]
      %v266 = vld [vmem:[%s1 + $0x10] sm:$0xff]
      %v267 = vld [vmem:[%s1 + $0x18] sm:$0xff]
      %v268 = vld [vmem:[%s3] sm:$0xff]
      %v269 = vld [vmem:[%s3 + $0x8] sm:$0xff]
      %v270 = vld [vmem:[%s3 + $0x10] sm:$0xff]
      %v271 = vld [vmem:[%s3 + $0x18] sm:$0xff]
      %v272 = vld [vmem:[%s2] sm:$0xff]
      %v273 = vld [vmem:[%s2 + $0x8] sm:$0xff]
      %v274 = vld [vmem:[%s2 + $0x10] sm:$0xff]
      %v275 = vld [vmem:[%s2 + $0x18] sm:$0xff]
      %v276 = vld [vmem:[%s2 + $0x20] sm:$0xff]
      %v277 = vld [vmem:[%s2 + $0x28] sm:$0xff]
      %v278 = vld [vmem:[%s2 + $0x30] sm:$0xff]
      %v279 = vld [vmem:[%s2 + $0x38] sm:$0xff]
      %v280 = vld [vmem:[%s4] sm:$0xff]
      %v281 = vld [vmem:[%s4 + $0x8] sm:$0xff]
      %v282 = vld [vmem:[%s4 + $0x10] sm:$0xff]
      %v283 = vld [vmem:[%s4 + $0x18] sm:$0xff]
      %v284 = vld [vmem:[%s4 + $0x20] sm:$0xff]
      %v285 = vld [vmem:[%s4 + $0x28] sm:$0xff]
      %v286 = vld [vmem:[%s4 + $0x30] sm:$0xff]
      %v287 = vld [vmem:[%s4 + $0x38] sm:$0xff]
      %v288 = vld [vmem:[%s252] sm:$0xff]
      %v290 = vcombine.high %v288, %v288
      %vm291 = vcmask 31744
      %v293 = vsel %vm291, %v264, 0
      %v296 = vsel %vm291, %v265, 0
      %v299 = vsel %vm291, %v266, 0
      %v302 = vsel %vm291, %v267, 0
      %vm304 = vcmask 1043456
      %v305 = vsel %vm304, %v288, 0
      %v307 = vsel %vm304, %v290, 0
      %309 = vmatprep.subr.mxu0 %v307
      %310 = vmatpush1.msra.mxu0 %v305
      %311 = vmatprep.subr.mxu0 0.0
      %312 = vmatpush1.msra.mxu0 0.0
      %313 = vmatprep.subr.mxu0 0.0
      %314 = vmatpush1.msra.mxu0 0.0
      %315 = vmatprep.subr.mxu0 0.0
      %316 = vmatpush1.msra.mxu0 0.0
      %317 = vmatprep.subr.mxu0 0.0
      %318 = vmatpush1.msra.mxu0 0.0
      %319 = vmatprep.subr.mxu0 0.0
      %320 = vmatpush1.msra.mxu0 0.0
      %321 = vmatprep.subr.mxu0 0.0
      %322 = vmatpush1.msra.mxu0 0.0
      %323 = vmatprep.subr.mxu0 0.0
      %324 = vmatpush1.msra.mxu0 0.0
      %325 = vmatprep.subr.mxu0 0.0
      %326 = vmatpush1.msra.mxu0 0.0
      %327 = vmatprep.subr.mxu0 0.0
      %328 = vmatpush1.msra.mxu0 0.0
      %329 = vmatprep.subr.mxu0 0.0
      %330 = vmatpush1.msra.mxu0 0.0
      %331 = vmatprep.subr.mxu0 0.0
      %332 = vmatpush1.msra.mxu0 0.0
      %333 = vmatprep.subr.mxu0 0.0
      %334 = vmatpush1.msra.mxu0 0.0
      %335 = vmatprep.subr.mxu0 0.0
      %336 = vmatpush1.msra.mxu0 0.0
      %337 = vmatprep.subr.mxu0 0.0
      %338 = vmatpush1.msra.mxu0 0.0
      %339 = vmatprep.subr.mxu0 0.0
      %340 = vmatpush1.msra.mxu0 0.0
      %341 = vmatprep.subr.mxu0 0.0
      %342 = vmatpush1.msra.mxu0 0.0
      %343 = vmatprep.subr.mxu0 0.0
      %344 = vmatpush1.msra.mxu0 0.0
      %345 = vmatprep.subr.mxu0 0.0
      %346 = vmatpush1.msra.mxu0 0.0
      %347 = vmatprep.subr.mxu0 0.0
      %348 = vmatpush1.msra.mxu0 0.0
      %349 = vmatprep.subr.mxu0 0.0
      %350 = vmatpush1.msra.mxu0 0.0
      %351 = vmatprep.subr.mxu0 0.0
      %352 = vmatpush1.msra.mxu0 0.0
      %353 = vmatprep.subr.mxu0 0.0
      %354 = vmatpush1.msra.mxu0 0.0
      %355 = vmatprep.subr.mxu0 0.0
      %356 = vmatpush1.msra.mxu0 0.0
      %357 = vmatprep.subr.mxu0 0.0
      %358 = vmatpush1.msra.mxu0 0.0
      %359 = vmatprep.subr.mxu0 0.0
      %360 = vmatpush1.msra.mxu0 0.0
      %361 = vmatprep.subr.mxu0 0.0
      %362 = vmatpush1.msra.mxu0 0.0
      %363 = vmatprep.subr.mxu0 0.0
      %364 = vmatpush1.msra.mxu0 0.0
      %365 = vmatprep.subr.mxu0 0.0
      %366 = vmatpush1.msra.mxu0 0.0
      %367 = vmatprep.subr.mxu0 0.0
      %368 = vmatpush1.msra.mxu0 0.0
      %369 = vmatprep.subr.mxu0 0.0
      %370 = vmatpush1.msra.mxu0 0.0
      %371 = vmatprep.subr.mxu0 0.0
      %372 = vmatpush1.msra.mxu0 0.0
      %373 = vmatprep.mubr.f32.mxu0 0.0
      %374 = vmatmul.mubr.f32.gmra.mrb[0].mxu0 %v293
      %v375 = vpop.f32.mrb[0].mxu0
      %v376 = vadd.f32 %v272, %v375
      %v377 = vpop.f32.mrb[0].mxu0
      %v378 = vadd.f32 %v273, %v377
      %379 = vmatprep.mubr.f32.mxu0 0.0
      %380 = vmatmul.mubr.f32.gmra.mrb[0].mxu0 %v296
      %v381 = vpop.f32.mrb[0].mxu0
      %v382 = vadd.f32 %v274, %v381
      %v383 = vpop.f32.mrb[0].mxu0
      %v384 = vadd.f32 %v275, %v383
      %385 = vmatprep.mubr.f32.mxu0 0.0
      %386 = vmatmul.mubr.f32.gmra.mrb[0].mxu0 %v299
      %v387 = vpop.f32.mrb[0].mxu0
      %v388 = vadd.f32 %v276, %v387
      %v389 = vpop.f32.mrb[0].mxu0
      %v390 = vadd.f32 %v277, %v389
      %391 = vmatprep.mubr.f32.mxu0 0.0
      %392 = vmatmul.mubr.f32.gmra.mrb[0].mxu0 %v302
      %v393 = vpop.f32.mrb[0].mxu0
      %v394 = vadd.f32 %v278, %v393
      %v395 = vpop.f32.mrb[0].mxu0
      %v396 = vadd.f32 %v279, %v395
      %397 = vdwg.mxu0
      %vm398 = vcmp.ge.f32.partialorder %v376, 0.0
      %vm399 = vcmp.ge.f32.partialorder %v378, 0.0
      %vm400 = vcmp.ge.f32.partialorder %v382, 0.0
      %vm401 = vcmp.ge.f32.partialorder %v384, 0.0
      %vm402 = vcmp.ge.f32.partialorder %v388, 0.0
      %vm403 = vcmp.ge.f32.partialorder %v390, 0.0
      %vm404 = vcmp.ge.f32.partialorder %v394, 0.0
      %vm405 = vcmp.ge.f32.partialorder %v396, 0.0
      %v406 = vmul.f32 %v376, 0.01
      %v407 = vmul.f32 %v378, 0.01
      %v408 = vmul.f32 %v382, 0.01
      %v409 = vmul.f32 %v384, 0.01
      %v410 = vmul.f32 %v388, 0.01
      %v411 = vmul.f32 %v390, 0.01
      %v412 = vmul.f32 %v394, 0.01
      %v413 = vmul.f32 %v396, 0.01
      %v414 = vsel %vm398, %v376, %v406
      %v415 = vsel %vm399, %v378, %v407
      %v416 = vsel %vm400, %v382, %v408
      %v417 = vsel %vm401, %v384, %v409
      %v418 = vsel %vm402, %v388, %v410
      %v419 = vsel %vm403, %v390, %v411
      %v420 = vsel %vm404, %v394, %v412
      %v421 = vsel %vm405, %v396, %v413
      %vm422 = vcmask 261120
      %v424 = vsel %vm422, %v268, 0
      %v427 = vsel %vm422, %v269, 0
      %v430 = vsel %vm422, %v270, 0
      %v433 = vsel %vm422, %v271, 0
      %435 = vmatprep.subr.mxu0 %v415
      %436 = vmatpush1.msra.mxu0 %v414
      %437 = vmatprep.subr.mxu0 %v417
      %438 = vmatpush1.msra.mxu0 %v416
      %439 = vmatprep.subr.mxu0 %v419
      %440 = vmatpush1.msra.mxu0 %v418
      %441 = vmatprep.subr.mxu0 %v421
      %442 = vmatpush1.msra.mxu0 %v420
      %443 = vmatprep.subr.mxu0 0.0
      %444 = vmatpush1.msra.mxu0 0.0
      %445 = vmatprep.subr.mxu0 0.0
      %446 = vmatpush1.msra.mxu0 0.0
      %447 = vmatprep.subr.mxu0 0.0
      %448 = vmatpush1.msra.mxu0 0.0
      %449 = vmatprep.subr.mxu0 0.0
      %450 = vmatpush1.msra.mxu0 0.0
      %451 = vmatprep.subr.mxu0 0.0
      %452 = vmatpush1.msra.mxu0 0.0
      %453 = vmatprep.subr.mxu0 0.0
      %454 = vmatpush1.msra.mxu0 0.0
      %455 = vmatprep.subr.mxu0 0.0
      %456 = vmatpush1.msra.mxu0 0.0
      %457 = vmatprep.subr.mxu0 0.0
      %458 = vmatpush1.msra.mxu0 0.0
      %459 = vmatprep.subr.mxu0 0.0
      %460 = vmatpush1.msra.mxu0 0.0
      %461 = vmatprep.subr.mxu0 0.0
      %462 = vmatpush1.msra.mxu0 0.0
      %463 = vmatprep.subr.mxu0 0.0
      %464 = vmatpush1.msra.mxu0 0.0
      %465 = vmatprep.subr.mxu0 0.0
      %466 = vmatpush1.msra.mxu0 0.0
      %467 = vmatprep.subr.mxu0 0.0
      %468 = vmatpush1.msra.mxu0 0.0
      %469 = vmatprep.subr.mxu0 0.0
      %470 = vmatpush1.msra.mxu0 0.0
      %471 = vmatprep.subr.mxu0 0.0
      %472 = vmatpush1.msra.mxu0 0.0
      %473 = vmatprep.subr.mxu0 0.0
      %474 = vmatpush1.msra.mxu0 0.0
      %475 = vmatprep.subr.mxu0 0.0
      %476 = vmatpush1.msra.mxu0 0.0
      %477 = vmatprep.subr.mxu0 0.0
      %478 = vmatpush1.msra.mxu0 0.0
      %479 = vmatprep.subr.mxu0 0.0
      %480 = vmatpush1.msra.mxu0 0.0
      %481 = vmatprep.subr.mxu0 0.0
      %482 = vmatpush1.msra.mxu0 0.0
      %483 = vmatprep.subr.mxu0 0.0
      %484 = vmatpush1.msra.mxu0 0.0
      %485 = vmatprep.subr.mxu0 0.0
      %486 = vmatpush1.msra.mxu0 0.0
      %487 = vmatprep.subr.mxu0 0.0
      %488 = vmatpush1.msra.mxu0 0.0
      %489 = vmatprep.subr.mxu0 0.0
      %490 = vmatpush1.msra.mxu0 0.0
      %491 = vmatprep.subr.mxu0 0.0
      %492 = vmatpush1.msra.mxu0 0.0
      %493 = vmatprep.subr.mxu0 0.0
      %494 = vmatpush1.msra.mxu0 0.0
      %495 = vmatprep.subr.mxu0 0.0
      %496 = vmatpush1.msra.mxu0 0.0
      %497 = vmatprep.subr.mxu0 0.0
      %498 = vmatpush1.msra.mxu0 0.0
      %499 = vmatprep.mubr.f32.mxu0 0.0
      %500 = vmatmul.mubr.f32.gmra.mrb[0].mxu0 %v424
      %v501 = vpop.f32.mrb[0].mxu0
      %v502 = vadd.f32 %v280, %v501
      %v503 = vpop.f32.mrb[0].mxu0
      %v504 = vadd.f32 %v281, %v503
      %505 = vmatprep.mubr.f32.mxu0 0.0
      %506 = vmatmul.mubr.f32.gmra.mrb[0].mxu0 %v427
      %v507 = vpop.f32.mrb[0].mxu0
      %v508 = vadd.f32 %v282, %v507
      %v509 = vpop.f32.mrb[0].mxu0
      %v510 = vadd.f32 %v283, %v509
      %511 = vmatprep.mubr.f32.mxu0 0.0
      %512 = vmatmul.mubr.f32.gmra.mrb[0].mxu0 %v430
      %v513 = vpop.f32.mrb[0].mxu0
      %v514 = vadd.f32 %v284, %v513
      %v515 = vpop.f32.mrb[0].mxu0
      %v516 = vadd.f32 %v285, %v515
      %517 = vmatprep.mubr.f32.mxu0 0.0
      %518 = vmatmul.mubr.f32.gmra.mrb[0].mxu0 %v433
      %v519 = vpop.f32.mrb[0].mxu0
      %v520 = vadd.f32 %v286, %v519
      %v521 = vpop.f32.mrb[0].mxu0
      %v522 = vadd.f32 %v287, %v521
      %523 = vdwg.mxu0
      %vm524 = vcmp.ge.f32.partialorder %v502, 0.0
      %vm525 = vcmp.ge.f32.partialorder %v504, 0.0
      %vm526 = vcmp.ge.f32.partialorder %v508, 0.0
      %vm527 = vcmp.ge.f32.partialorder %v510, 0.0
      %vm528 = vcmp.ge.f32.partialorder %v514, 0.0
      %vm529 = vcmp.ge.f32.partialorder %v516, 0.0
      %vm530 = vcmp.ge.f32.partialorder %v520, 0.0
      %vm531 = vcmp.ge.f32.partialorder %v522, 0.0
      %v532 = vmul.f32 %v502, 0.01
      %v533 = vmul.f32 %v504, 0.01
      %v534 = vmul.f32 %v508, 0.01
      %v535 = vmul.f32 %v510, 0.01
      %v536 = vmul.f32 %v514, 0.01
      %v537 = vmul.f32 %v516, 0.01
      %v538 = vmul.f32 %v520, 0.01
      %v539 = vmul.f32 %v522, 0.01
      %v540 = vsel %vm524, %v502, %v532
      %v541 = vsel %vm525, %v504, %v533
      %v542 = vsel %vm526, %v508, %v534
      %v543 = vsel %vm527, %v510, %v535
      %v544 = vsel %vm528, %v514, %v536
      %v545 = vsel %vm529, %v516, %v537
      %v546 = vsel %vm530, %v520, %v538
      %v547 = vsel %vm531, %v522, %v539
      %548 = vst [vmem:[%s262] sm:$0xff] %v540
      %549 = vst [vmem:[%s262 + $0x8] sm:$0xff] %v541
      %550 = vst [vmem:[%s262 + $0x10] sm:$0xff] %v542
      %551 = vst [vmem:[%s262 + $0x18] sm:$0xff] %v543
      %552 = vst [vmem:[%s262 + $0x20] sm:$0xff] %v544
      %553 = vst [vmem:[%s262 + $0x28] sm:$0xff] %v545
      %554 = vst [vmem:[%s262 + $0x30] sm:$0xff] %v546
      %555 = vst [vmem:[%s262 + $0x38] sm:$0xff] %v547
      %s556 = smul.u32 2, %s21
      %p557 = scmp.lt.s32.totalorder %s20, 1
      %s558 = scalar_select %p557, %s20, 1
      %p559 = scmp.lt.s32.totalorder %s556, 1
      %s560 = scalar_select %p559, %s556, 1
      %s561 = smul.addr %s558, 8
      %s562 = sadd.s32 %s560, %s561
      %s563 = smul.addr %s562, 8
      %s564 = scalar_lea.vmem %s5, %s563
      // Predicated region
      $region41: #{_stnet_nchw.1} parent=39 // pred_check
        %p565 = pneg %p160
      $region42: #{_stnet_nchw.1} parent=39 // pred_check_branch
        %567 = sbr.rel (%p565) target = $region44
      $region43: #{_stnet_nchw.1} parent=39 // pred_region
        %s568 = smul.u32 2, %s21
      $region44: #{_stnet_nchw.1} parent=39 // pred_fallthru
        _
    $region40: #{_stnet_nchw.1} parent=5 // pred_fallthru
      _
    %p569 = scmp.le.s32.totalorder 2, %s11
    // Predicated region
    $region45: #{_stnet_nchw.1} parent=5 // pred_check
      %p570 = pneg %p569
    $region46: #{_stnet_nchw.1} parent=5 // pred_check_branch
      %572 = sbr.rel (%p570) target = $region48
    $region47: #{_stnet_nchw.1} parent=5 // pred_region
      %s573 = ssub.s32 %s11, 2
      // Predicated region
      $region49: #{_stnet_nchw.1} parent=47 // pred_check
        %p574 = pneg %p166
      $region50: #{_stnet_nchw.1} parent=47 // pred_check_branch
        %576 = sbr.rel (%p574) target = $region52
      $region51: #{_stnet_nchw.1} parent=47 // pred_region
        %s577 = smul.u32 2, %s23
        %p578 = scmp.lt.s32.totalorder %s22, 1
        %s579 = scalar_select %p578, %s22, 1
        %p580 = scmp.lt.s32.totalorder %s577, 1
        %s581 = scalar_select %p580, %s577, 1
        %s582 = smul.addr %s579, 8
        %s583 = sadd.s32 %s581, %s582
        %s584 = smul.addr %s583, 8
        %s585 = scalar_lea.vmem %s5, %s584
      $region52: #{_stnet_nchw.1} parent=47 // pred_fallthru
        _
    $region48: #{_stnet_nchw.1} parent=5 // pred_fallthru
      _
  $region6: #{_stnet_nchw.1} parent=0 // loop_footer
    %s15 = sadd.s32 1, %s11
  $region7: #{_stnet_nchw.1} parent=0 // loop_footer_branch
    %10 = sbr.rel target = $region3
  $region8: #{_stnet_nchw.1} parent=0 // loop_exit
    _

</llo_original>
